<compile_context>
chip_gen: v6e
topology: v6e:2x2x1
jax: 0.10.0
libtpu: 0.0.40
codegen_flags: <defaults>
</compile_context>

<pallas_src>
import functools

import jax
import jax.numpy as jnp
from jax.experimental import pallas as pl
from jax.experimental.pallas import tpu as pltpu


def _round_up(x, m):
    return (x + m - 1) // m * m


def _conv_bn_relu_kernel(x_ref, w_ref, b_ref, o_ref, *, KH, KW, W, pad, L):
    # x_ref: (1, Cin, LPAD)  row-flattened, H-padded input (lane = flat spatial)
    # w_ref: (Cout, K)       BN-scale-folded weights, K = KH*KW*Cin
    # b_ref: (Cout, 1)       folded BN bias (beta - mean * scale)
    # o_ref: (1, Cout, L)    L = H*W (lane-dense output)
    x = x_ref[0]                                               # (Cin, LPAD)

    # Output column index j (= p mod W) per lane, used to mask the columns that
    # would otherwise wrap across image rows (these are the width-pad zeros).
    col = jax.lax.broadcasted_iota(jnp.int32, (1, L), 1) % W   # (1, L)

    slabs = []
    for kh in range(KH):                 # static unroll: 9 lane-offset slices
        for kw in range(KW):
            off = kh * W + kw            # static lane offset into the flat image
            slab = x[:, off:off + L]     # (Cin, L)
            jj = kw - pad
            if jj < 0:                   # left width-pad columns -> 0
                slab = jnp.where(col >= -jj, slab, 0.0)
            elif jj > 0:                 # right width-pad columns -> 0
                slab = jnp.where(col < W - jj, slab, 0.0)
            slabs.append(slab)
    patches = jnp.concatenate(slabs, axis=0)                   # (K, L) im2col

    # Single MXU push: (Cout, K) @ (K, L) -> (Cout, L), f32 accumulate.
    acc = jnp.dot(w_ref[...], patches, preferred_element_type=jnp.float32)

    # Folded BN bias + ReLU (f32 epilogue), lane-dense store.
    y = jnp.maximum(acc + b_ref[...], 0.0)
    o_ref[0] = y.astype(o_ref.dtype)


def conv_bn_relu(x_nchw, weight_oihw, gamma, beta, running_mean, running_var,
                 *, stride=1, pad=1, eps=1e-5):
    """ConvBnRelu forward.  x_nchw: (N, Cin, H, W) f32.  Returns (N, Cout, H, W)."""
    assert stride == 1, "only stride=1 implemented in this kernel"
    N, Cin, H, W = x_nchw.shape
    Cout, Cin2, KH, KW = weight_oihw.shape
    assert Cin2 == Cin, "groups != 1 not implemented"
    Ho = H + 2 * pad - (KH - 1)
    Wo = W + 2 * pad - (KW - 1)
    assert Ho == H and Wo == W, "kernel implements stride-1 'same' convolution"

    L = H * W                                  # flat spatial size (lane axis)
    K = KH * KW * Cin                          # im2col contraction depth
    max_off = (KH - 1) * W + (KW - 1)
    LPAD = _round_up(max(max_off + L, pad + (H + 2 * pad) * W), 128)

    # --- tiny wrapper-side prep (all cheap, fused XLA ops; no transposes) ----
    # H-pad, flatten rows (row stride = W), then left-shift by `pad` and
    # zero-extend to LPAD so every tap offset kh*W+kw stays in-bounds.
    x_padH = jnp.pad(x_nchw.astype(jnp.float32),
                     ((0, 0), (0, 0), (pad, pad), (0, 0)))
    xf = x_padH.reshape(N, Cin, (H + 2 * pad) * W)
    xf = jnp.pad(xf, ((0, 0), (0, 0), (pad, LPAD - pad - (H + 2 * pad) * W)))

    # Fold BatchNorm scale into the conv weights; keep only the bias for the kernel.
    scale = gamma / jnp.sqrt(running_var + eps)                       # (Cout,)
    w_mat = jnp.transpose(weight_oihw, (0, 2, 3, 1)).reshape(Cout, K)  # (Cout, K)
    w_mat = (w_mat * scale[:, None]).astype(jnp.float32)
    bias = (beta - running_mean * scale).reshape(Cout, 1).astype(jnp.float32)

    kernel = functools.partial(_conv_bn_relu_kernel,
                               KH=KH, KW=KW, W=W, pad=pad, L=L)

    out_flat = pl.pallas_call(
        kernel,
        out_shape=jax.ShapeDtypeStruct((N, Cout, L), jnp.float32),
        grid_spec=pltpu.PrefetchScalarGridSpec(
            num_scalar_prefetch=0,
            grid=(N,),
            in_specs=[
                pl.BlockSpec((1, Cin, LPAD), lambda b: (b, 0, 0)),
                pl.BlockSpec((Cout, K), lambda b: (0, 0)),
                pl.BlockSpec((Cout, 1), lambda b: (0, 0)),
            ],
            out_specs=pl.BlockSpec((1, Cout, L), lambda b: (b, 0, 0)),
        ),
        compiler_params=pltpu.CompilerParams(
            dimension_semantics=("parallel",)),
    )(xf, w_mat, bias)

    # Output is already NCHW-ordered; reshape is free (no transpose).
    return out_flat.reshape(N, Cout, Ho, Wo)


def _reference(x_nchw, weight_oihw, gamma, beta, running_mean, running_var,
               *, stride=1, pad=1, eps=1e-5):
    """Pure-JAX reference (same semantics) for a sanity check."""
    x_nhwc = jnp.transpose(x_nchw, (0, 2, 3, 1))
    w_hwio = jnp.transpose(weight_oihw, (2, 3, 1, 0))
    y = jax.lax.conv_general_dilated(
        x_nhwc, w_hwio, window_strides=(stride, stride),
        padding=[(pad, pad), (pad, pad)],
        dimension_numbers=("NHWC", "HWIO", "NHWC"))
    scale = gamma / jnp.sqrt(running_var + eps)
    bias = beta - running_mean * scale
    y = y * scale + bias
    y = jnp.maximum(y, 0.0)
    return jnp.transpose(y, (0, 3, 1, 2))


if __name__ == "__main__":
    # ConvBnRelu(in_planes=4, out_planes=8, ksize=3, stride=1, pad=1)
    N, Cin, H, W = 2, 4, 16, 16
    Cout, KH, KW = 8, 3, 3

    key = jax.random.PRNGKey(0)
    kx, kw, kg, kb, km, kv = jax.random.split(key, 6)

    x = jax.random.normal(kx, (N, Cin, H, W), dtype=jnp.float32)
    weight = 0.1 * jax.random.normal(kw, (Cout, Cin, KH, KW), dtype=jnp.float32)
    # Deterministic (non-trivial) BatchNorm parameters / running stats.
    gamma = 1.0 + 0.1 * jax.random.normal(kg, (Cout,), dtype=jnp.float32)
    beta = 0.1 * jax.random.normal(kb, (Cout,), dtype=jnp.float32)
    running_mean = 0.05 * jax.random.normal(km, (Cout,), dtype=jnp.float32)
    running_var = 1.0 + 0.1 * jax.random.uniform(kv, (Cout,), dtype=jnp.float32)

    out = conv_bn_relu(x, weight, gamma, beta, running_mean, running_var,
                       stride=1, pad=1)
    out = jax.block_until_ready(out)

    ref = _reference(x, weight, gamma, beta, running_mean, running_var,
                     stride=1, pad=1)
    assert out.shape == (N, Cout, H, W), out.shape
    assert jnp.allclose(out, ref, atol=1e-4, rtol=1e-4), \
        float(jnp.max(jnp.abs(out - ref)))

    print("KERNEL_OK")
</pallas_src>

<mosaic_0001>
module attributes {stable_mosaic.version = 11 : i64} {
  func.func @_conv_bn_relu_kernel(%arg0: i32, %arg1: memref<1x4x384xf32, #tpu.memory_space<vmem>>, %arg2: memref<8x36xf32, #tpu.memory_space<vmem>>, %arg3: memref<8x1xf32, #tpu.memory_space<vmem>>, %arg4: memref<1x8x256xf32, #tpu.memory_space<vmem>>) attributes {dimension_semantics = [#tpu.dimension_semantics<parallel>], iteration_bounds = array<i64: 2>, scalar_prefetch = 0 : i64, scratch_operands = 0 : i64, tpu.core_type = #tpu.core_type<tc>, window_params = [{transform_indices = @transform_0, window_bounds = array<i64: 1, 4, 384>}, {pipeline_mode = #tpu.pipeline_mode<synchronous>, transform_indices = @transform_1, window_bounds = array<i64: 8, 36>}, {pipeline_mode = #tpu.pipeline_mode<synchronous>, transform_indices = @transform_2, window_bounds = array<i64: 8, 1>}, {transform_indices = @transform_3, window_bounds = array<i64: 1, 8, 256>}]} {
    %c0 = arith.constant 0 : index
    %c0_0 = arith.constant 0 : index
    %c0_1 = arith.constant 0 : index
    %0 = vector.load %arg1[%c0, %c0_0, %c0_1] : memref<1x4x384xf32, #tpu.memory_space<vmem>>, vector<1x4x384xf32>
    %1 = vector.shape_cast %0 : vector<1x4x384xf32> to vector<4x384xf32>
    %2 = tpu.iota {dimensions = array<i32: 1>} : vector<1x256xi32>
    %c16_i32 = arith.constant 16 : i32
    %c0_i32 = arith.constant 0 : i32
    %3 = arith.cmpi eq, %c16_i32, %c0_i32 : i32
    %c1_i32 = arith.constant 1 : i32
    %4 = arith.select %3, %c1_i32, %c16_i32 : i32
    %5 = vector.broadcast %4 : i32 to vector<1x256xi32>
    %6 = arith.remsi %2, %5 : vector<1x256xi32>
    %c0_i32_2 = arith.constant 0 : i32
    %7 = vector.broadcast %c0_i32_2 : i32 to vector<1x256xi32>
    %8 = arith.cmpi ne, %6, %7 : vector<1x256xi32>
    %c0_i32_3 = arith.constant 0 : i32
    %9 = vector.broadcast %c0_i32_3 : i32 to vector<1x256xi32>
    %10 = arith.cmpi slt, %6, %9 : vector<1x256xi32>
    %c0_i32_4 = arith.constant 0 : i32
    %11 = arith.cmpi slt, %4, %c0_i32_4 : i32
    %12 = vector.broadcast %11 : i1 to vector<1x256xi1>
    %13 = vector.broadcast %12 : vector<1x256xi1> to vector<1x256xi1>
    %14 = arith.xori %10, %13 : vector<1x256xi1>
    %15 = arith.andi %14, %8 : vector<1x256xi1>
    %16 = vector.broadcast %4 : i32 to vector<1x256xi32>
    %17 = arith.addi %6, %16 : vector<1x256xi32>
    %18 = arith.select %15, %17, %6 : vector<1x256xi1>, vector<1x256xi32>
    %19 = vector.extract_strided_slice %1 {offsets = [0, 0], sizes = [4, 256], strides = [1, 1]} : vector<4x384xf32> to vector<4x256xf32>
    %c1_i32_5 = arith.constant 1 : i32
    %20 = vector.broadcast %c1_i32_5 : i32 to vector<1x256xi32>
    %21 = arith.cmpi sge, %18, %20 : vector<1x256xi32>
    %cst = arith.constant 0.000000e+00 : f32
    %22 = vector.shape_cast %21 : vector<1x256xi1> to vector<1x256xi1>
    %23 = vector.broadcast %22 : vector<1x256xi1> to vector<4x256xi1>
    %24 = vector.broadcast %cst : f32 to vector<4x256xf32>
    %25 = arith.select %23, %19, %24 : vector<4x256xi1>, vector<4x256xf32>
    %26 = vector.extract_strided_slice %1 {offsets = [0, 1], sizes = [4, 256], strides = [1, 1]} : vector<4x384xf32> to vector<4x256xf32>
    %27 = vector.extract_strided_slice %1 {offsets = [0, 2], sizes = [4, 256], strides = [1, 1]} : vector<4x384xf32> to vector<4x256xf32>
    %c15_i32 = arith.constant 15 : i32
    %28 = vector.broadcast %c15_i32 : i32 to vector<1x256xi32>
    %29 = arith.cmpi slt, %18, %28 : vector<1x256xi32>
    %cst_6 = arith.constant 0.000000e+00 : f32
    %30 = vector.shape_cast %29 : vector<1x256xi1> to vector<1x256xi1>
    %31 = vector.broadcast %30 : vector<1x256xi1> to vector<4x256xi1>
    %32 = vector.broadcast %cst_6 : f32 to vector<4x256xf32>
    %33 = arith.select %31, %27, %32 : vector<4x256xi1>, vector<4x256xf32>
    %34 = vector.extract_strided_slice %1 {offsets = [0, 16], sizes = [4, 256], strides = [1, 1]} : vector<4x384xf32> to vector<4x256xf32>
    %c1_i32_7 = arith.constant 1 : i32
    %35 = vector.broadcast %c1_i32_7 : i32 to vector<1x256xi32>
    %36 = arith.cmpi sge, %18, %35 : vector<1x256xi32>
    %cst_8 = arith.constant 0.000000e+00 : f32
    %37 = vector.shape_cast %36 : vector<1x256xi1> to vector<1x256xi1>
    %38 = vector.broadcast %37 : vector<1x256xi1> to vector<4x256xi1>
    %39 = vector.broadcast %cst_8 : f32 to vector<4x256xf32>
    %40 = arith.select %38, %34, %39 : vector<4x256xi1>, vector<4x256xf32>
    %41 = vector.extract_strided_slice %1 {offsets = [0, 17], sizes = [4, 256], strides = [1, 1]} : vector<4x384xf32> to vector<4x256xf32>
    %42 = vector.extract_strided_slice %1 {offsets = [0, 18], sizes = [4, 256], strides = [1, 1]} : vector<4x384xf32> to vector<4x256xf32>
    %c15_i32_9 = arith.constant 15 : i32
    %43 = vector.broadcast %c15_i32_9 : i32 to vector<1x256xi32>
    %44 = arith.cmpi slt, %18, %43 : vector<1x256xi32>
    %cst_10 = arith.constant 0.000000e+00 : f32
    %45 = vector.shape_cast %44 : vector<1x256xi1> to vector<1x256xi1>
    %46 = vector.broadcast %45 : vector<1x256xi1> to vector<4x256xi1>
    %47 = vector.broadcast %cst_10 : f32 to vector<4x256xf32>
    %48 = arith.select %46, %42, %47 : vector<4x256xi1>, vector<4x256xf32>
    %49 = vector.extract_strided_slice %1 {offsets = [0, 32], sizes = [4, 256], strides = [1, 1]} : vector<4x384xf32> to vector<4x256xf32>
    %c1_i32_11 = arith.constant 1 : i32
    %50 = vector.broadcast %c1_i32_11 : i32 to vector<1x256xi32>
    %51 = arith.cmpi sge, %18, %50 : vector<1x256xi32>
    %cst_12 = arith.constant 0.000000e+00 : f32
    %52 = vector.shape_cast %51 : vector<1x256xi1> to vector<1x256xi1>
    %53 = vector.broadcast %52 : vector<1x256xi1> to vector<4x256xi1>
    %54 = vector.broadcast %cst_12 : f32 to vector<4x256xf32>
    %55 = arith.select %53, %49, %54 : vector<4x256xi1>, vector<4x256xf32>
    %56 = vector.extract_strided_slice %1 {offsets = [0, 33], sizes = [4, 256], strides = [1, 1]} : vector<4x384xf32> to vector<4x256xf32>
    %57 = vector.extract_strided_slice %1 {offsets = [0, 34], sizes = [4, 256], strides = [1, 1]} : vector<4x384xf32> to vector<4x256xf32>
    %c15_i32_13 = arith.constant 15 : i32
    %58 = vector.broadcast %c15_i32_13 : i32 to vector<1x256xi32>
    %59 = arith.cmpi slt, %18, %58 : vector<1x256xi32>
    %cst_14 = arith.constant 0.000000e+00 : f32
    %60 = vector.shape_cast %59 : vector<1x256xi1> to vector<1x256xi1>
    %61 = vector.broadcast %60 : vector<1x256xi1> to vector<4x256xi1>
    %62 = vector.broadcast %cst_14 : f32 to vector<4x256xf32>
    %63 = arith.select %61, %57, %62 : vector<4x256xi1>, vector<4x256xf32>
    %64 = tpu.concatenate %25, %26, %33, %40, %41, %48, %55, %56, %63 in 0 : vector<4x256xf32>, vector<4x256xf32>, vector<4x256xf32>, vector<4x256xf32>, vector<4x256xf32>, vector<4x256xf32>, vector<4x256xf32>, vector<4x256xf32>, vector<4x256xf32> -> vector<36x256xf32>
    %c0_15 = arith.constant 0 : index
    %c0_16 = arith.constant 0 : index
    %65 = vector.load %arg2[%c0_15, %c0_16] : memref<8x36xf32, #tpu.memory_space<vmem>>, vector<8x36xf32>
    %cst_17 = arith.constant dense<0.000000e+00> : vector<8x256xf32>
    %66 = tpu.matmul %65, %64, %cst_17 {dimension_numbers = #tpu.dot_dimension_numbers<[1], [0], [0], [1], [0, 0, 1, 1], [], []>} : vector<8x36xf32>, vector<36x256xf32>, vector<8x256xf32> -> vector<8x256xf32>
    %c0_18 = arith.constant 0 : index
    %c0_19 = arith.constant 0 : index
    %67 = vector.load %arg3[%c0_18, %c0_19] : memref<8x1xf32, #tpu.memory_space<vmem>>, vector<8x1xf32>
    %68 = vector.broadcast %67 : vector<8x1xf32> to vector<8x256xf32>
    %69 = arith.addf %66, %68 : vector<8x256xf32>
    %cst_20 = arith.constant 0.000000e+00 : f32
    %70 = vector.broadcast %cst_20 : f32 to vector<8x256xf32>
    %71 = arith.maximumf %69, %70 : vector<8x256xf32>
    %c0_21 = arith.constant 0 : index
    %c0_22 = arith.constant 0 : index
    %c0_23 = arith.constant 0 : index
    %72 = vector.load %arg4[%c0_21, %c0_22, %c0_23] : memref<1x8x256xf32, #tpu.memory_space<vmem>>, vector<1x8x256xf32>
    %73 = vector.shape_cast %72 : vector<1x8x256xf32> to vector<8x256xf32>
    %74 = vector.shape_cast %71 : vector<8x256xf32> to vector<1x8x256xf32>
    tpu.vector_store %arg4[%c0_21, %c0_22, %c0_23], %74 {strides = array<i32>} : memref<1x8x256xf32, #tpu.memory_space<vmem>>, vector<1x8x256xf32>,
    return
  }
  func.func @transform_0(%arg0: i32) -> (i32, i32, i32) {
    %c0_i32 = arith.constant 0 : i32
    %c0_i32_0 = arith.constant 0 : i32
    %c0_i32_1 = arith.constant 0 : i32
    return %arg0, %c0_i32, %c0_i32_0 : i32, i32, i32
  }
  func.func @transform_1(%arg0: i32) -> (i32, i32) {
    %c0_i32 = arith.constant 0 : i32
    %c0_i32_0 = arith.constant 0 : i32
    %c0_i32_1 = arith.constant 0 : i32
    return %c0_i32, %c0_i32_0 : i32, i32
  }
  func.func @transform_2(%arg0: i32) -> (i32, i32) {
    %c0_i32 = arith.constant 0 : i32
    %c0_i32_0 = arith.constant 0 : i32
    %c0_i32_1 = arith.constant 0 : i32
    return %c0_i32, %c0_i32_0 : i32, i32
  }
  func.func @transform_3(%arg0: i32) -> (i32, i32, i32) {
    %c0_i32 = arith.constant 0 : i32
    %c0_i32_0 = arith.constant 0 : i32
    %c0_i32_1 = arith.constant 0 : i32
    return %arg0, %c0_i32, %c0_i32_0 : i32, i32, i32
  }
}

</mosaic_0001>

<llo_original>
// kernel: tpu_custom_call.1
$region0: #{tpu_custom_call.1}
  #allocation0 [shape = 'u32[]', space=smem, size = 0x4, offset = 0x4, fixed_abs, tag = 'smem constant byte address 0x4 - core index']
  #allocation1 [shape = 'u32[144,128]{1,0:T(1,128)}', space=vmem, size = 0x12000, scoped, tag = 'internal scratch']
  %s0 = inlined_call_operand.hbm [shape: f32[2,4,384], index: 0, kind: input, shape index: {}]
  %s1 = inlined_call_operand.vmem [shape: f32[8,36], index: 1, kind: input, shape index: {}]
  %s2 = inlined_call_operand.vmem [shape: f32[8,1], index: 2, kind: input, shape index: {}]
  %s3 = inlined_call_operand.hbm [shape: f32[2,8,256], index: 3, kind: output, shape index: {}]
  %s4 = sld [smem:[#allocation0]]
  $region49: #{tpu_custom_call.1} parent=0
    _
  %s6 = ssub.s32 1, %s4
  %s7 = scalar_select 0, %s6, %s4
  $region1: #{tpu_custom_call.1} parent=0
    #allocation2 [shape = 'u8[12288]{0}', space=vmem, size = 0x3000, scoped, tag = 'input window, operand 0']
    #allocation3 [shape = 's32[2]{0}', space=sflag, size = 0x8, scoped, tag = 'scoped memory for tpu_custom_call.1']
    #allocation4 [shape = 's32[2]{0}', space=sflag, size = 0x8, scoped, tag = 'scoped memory for tpu_custom_call.1']
    #allocation5 [shape = 'u8[16384]{0}', space=vmem, size = 0x4000, scoped, tag = 'output window, operand 0']
    %8 = vsyncpa [#allocation3], 0
    %s9 = scalar_lea.sflag [#allocation3], 1
    %10 = vsyncpa %s9, 0
    %11 = vsyncpa [#allocation4], 0
    %s12 = scalar_lea.sflag [#allocation4], 1
    %13 = vsyncpa %s12, 0
    loop: start=0, step=1, limit=4
    $region2: #{tpu_custom_call.1} parent=1 // loop_pre_header
      _
    $region3: #{tpu_custom_call.1} parent=1 // loop_header
      %s15 = sphi 0, %s19
      %p16 = scmp.ge.s32.totalorder %s15, 4
      %s25 = sphi 0, %s27
      %s28 = sphi 0, %s25
      %s29 = sphi 0, %s28
      %s45 = sphi 0, %s29
      %s49 = sphi 0, %s49
      %s51 = sphi 0, %s49
      %s52 = sphi 0, %s51
      %s66 = sphi 0, %s52
      %s70 = sphi 0, %s70
      %s72 = sphi 0, %s70
      %s73 = sphi 0, %s72
      %s87 = sphi 0, %s73
      %s93 = sphi 0, %s95
      %s96 = sphi 0, %s93
      %s97 = sphi 0, %s96
      %s113 = sphi 0, %s97
    $region4: #{tpu_custom_call.1} parent=1 // loop_header_branch
      %18 = sbr.rel (%p16) target = $region8
    $region5: #{tpu_custom_call.1} parent=1 // loop_body
      %s20 = ssub.s32 %s15, 1
      %s21 = ssub.s32 %s15, 2
      %s22 = sadd.s32 %s15, 1
      %s23 = ssub.s32 %s15, %s22
      %p24 = scmp.eq.s32.totalorder %s23, 0
      %s26 = sadd.s32 %s25, 1
      %s27 = scalar_select %p24, %s25, %s26
      %p30 = pneg %p24
      %p31 = scmp.eq.s32.totalorder %s15, 1
      %p32 = por %p30, %p31
      %p33 = scmp.ne.s32.totalorder %s25, %s28
      %p34 = scmp.eq.s32.totalorder %s15, 0
      %p35 = por %p33, %p34
      %p36 = scmp.ne.s32.totalorder %s25, %s28
      %p37 = scmp.eq.s32.totalorder %s20, 1
      %p38 = por %p36, %p37
      %p39 = scmp.ne.s32.totalorder %s28, %s29
      %p40 = scmp.eq.s32.totalorder %s20, 0
      %p41 = por %p39, %p40
      %p42 = scmp.ne.s32.totalorder %s28, %s29
      %p43 = scmp.eq.s32.totalorder %s21, 1
      %p44 = por %p42, %p43
      %p46 = scmp.ne.s32.totalorder %s29, %s45
      %p47 = scmp.eq.s32.totalorder %s21, 0
      %p48 = por %p46, %p47
      %s50 = sadd.s32 %s49, 1
      %p53 = scmp.eq.s32.totalorder %s15, 1
      %p54 = scmp.ne.s32.totalorder %s49, %s51
      %p55 = scmp.eq.s32.totalorder %s15, 0
      %p56 = por %p54, %p55
      %p57 = scmp.ne.s32.totalorder %s49, %s51
      %p58 = scmp.eq.s32.totalorder %s20, 1
      %p59 = por %p57, %p58
      %p60 = scmp.ne.s32.totalorder %s51, %s52
      %p61 = scmp.eq.s32.totalorder %s20, 0
      %p62 = por %p60, %p61
      %p63 = scmp.ne.s32.totalorder %s51, %s52
      %p64 = scmp.eq.s32.totalorder %s21, 1
      %p65 = por %p63, %p64
      %p67 = scmp.ne.s32.totalorder %s52, %s66
      %p68 = scmp.eq.s32.totalorder %s21, 0
      %p69 = por %p67, %p68
      %s71 = sadd.s32 %s70, 1
      %p74 = scmp.eq.s32.totalorder %s15, 1
      %p75 = scmp.ne.s32.totalorder %s70, %s72
      %p76 = scmp.eq.s32.totalorder %s15, 0
      %p77 = por %p75, %p76
      %p78 = scmp.ne.s32.totalorder %s70, %s72
      %p79 = scmp.eq.s32.totalorder %s20, 1
      %p80 = por %p78, %p79
      %p81 = scmp.ne.s32.totalorder %s72, %s73
      %p82 = scmp.eq.s32.totalorder %s20, 0
      %p83 = por %p81, %p82
      %p84 = scmp.ne.s32.totalorder %s72, %s73
      %p85 = scmp.eq.s32.totalorder %s21, 1
      %p86 = por %p84, %p85
      %p88 = scmp.ne.s32.totalorder %s73, %s87
      %p89 = scmp.eq.s32.totalorder %s21, 0
      %p90 = por %p88, %p89
      %s91 = ssub.s32 %s15, %s22
      %p92 = scmp.eq.s32.totalorder %s91, 0
      %s94 = sadd.s32 %s93, 1
      %s95 = scalar_select %p92, %s93, %s94
      %p98 = pneg %p92
      %p99 = scmp.eq.s32.totalorder %s15, 1
      %p100 = por %p98, %p99
      %p101 = scmp.ne.s32.totalorder %s93, %s96
      %p102 = scmp.eq.s32.totalorder %s15, 0
      %p103 = por %p101, %p102
      %p104 = scmp.ne.s32.totalorder %s93, %s96
      %p105 = scmp.eq.s32.totalorder %s20, 1
      %p106 = por %p104, %p105
      %p107 = scmp.ne.s32.totalorder %s96, %s97
      %p108 = scmp.eq.s32.totalorder %s20, 0
      %p109 = por %p107, %p108
      %p110 = scmp.ne.s32.totalorder %s96, %s97
      %p111 = scmp.eq.s32.totalorder %s21, 1
      %p112 = por %p110, %p111
      %p114 = scmp.ne.s32.totalorder %s97, %s113
      %p115 = scmp.eq.s32.totalorder %s21, 0
      %p116 = por %p114, %p115
      %p117 = scmp.le.s32.totalorder 1, %s15
      %p118 = scmp.lt.s32.totalorder %s15, 3
      %p119 = pnand %p117, %p118
      %p120 = pneg %p119
      // Predicated region
      $region9: #{tpu_custom_call.1} parent=5 // pred_check
        _
      $region10: #{tpu_custom_call.1} parent=5 // pred_check_branch
        %122 = sbr.rel (%p119) target = $region12
      $region11: #{tpu_custom_call.1} parent=5 // pred_region
        %s123 = ssub.s32 %s15, 1
        // Predicated region
        $region13: #{tpu_custom_call.1} parent=11 // pred_check
          %p124 = pneg %p62
        $region14: #{tpu_custom_call.1} parent=11 // pred_check_branch
          %126 = sbr.rel (%p124) target = $region16
        $region15: #{tpu_custom_call.1} parent=11 // pred_region
          _
        $region16: #{tpu_custom_call.1} parent=11 // pred_fallthru
          _
        // Predicated region
        $region17: #{tpu_custom_call.1} parent=11 // pred_check
          %p127 = pneg %p83
        $region18: #{tpu_custom_call.1} parent=11 // pred_check_branch
          %129 = sbr.rel (%p127) target = $region20
        $region19: #{tpu_custom_call.1} parent=11 // pred_region
          _
        $region20: #{tpu_custom_call.1} parent=11 // pred_fallthru
          _
      $region12: #{tpu_custom_call.1} parent=5 // pred_fallthru
        _
      %p130 = scmp.lt.s32.totalorder %s15, 2
      // Predicated region
      $region21: #{tpu_custom_call.1} parent=5 // pred_check
        %p131 = pneg %p130
      $region22: #{tpu_custom_call.1} parent=5 // pred_check_branch
        %133 = sbr.rel (%p131) target = $region24
      $region23: #{tpu_custom_call.1} parent=5 // pred_region
        // Predicated region
        $region25: #{tpu_custom_call.1} parent=23 // pred_check
          %p134 = pneg %p35
        $region26: #{tpu_custom_call.1} parent=23 // pred_check_branch
          %136 = sbr.rel (%p134) target = $region28
        $region27: #{tpu_custom_call.1} parent=23 // pred_region
          %s137 = sand.u32 %s25, 1
          %s138 = scalar_lea.sflag [#allocation3], %s137
          %s139 = sand.u32 %s25, 1
          %s140 = smul.addr %s139, 12
          %s141 = scalar_lea.vmem [#allocation2], %s140
          %s143 = ssub.s32 192, 192
          %144 = vsyncadd %s138, %s143
          %s145 = smul.addr %s15, 3
          %s146 = smul.addr %s145, 64
          %s147 = scalar_lea.hbm %s0, %s146
          %s149 = sshll.u32 %s141, 4
          %s150 = int_to_ptr.vmem [resolvable:$true] %s149
          %152 = dma.hbm_to_vmem [thread:$0]  %s147, 192, %s150, %s138
        $region28: #{tpu_custom_call.1} parent=23 // pred_fallthru
          _
      $region24: #{tpu_custom_call.1} parent=5 // pred_fallthru
        _
      %p153 = scmp.le.s32.totalorder 1, %s15
      %p154 = scmp.lt.s32.totalorder %s15, 3
      %p155 = pnand %p153, %p154
      %p156 = pneg %p155
      // Predicated region
      $region29: #{tpu_custom_call.1} parent=5 // pred_check
        _
      $region30: #{tpu_custom_call.1} parent=5 // pred_check_branch
        %158 = sbr.rel (%p155) target = $region32
      $region31: #{tpu_custom_call.1} parent=5 // pred_region
        %s159 = ssub.s32 %s15, 1
        %s160 = sand.u32 %s28, 1
        %s161 = scalar_lea.sflag [#allocation3], %s160
        %s162 = sand.u32 %s28, 1
        %s163 = smul.addr %s162, 12
        %s164 = scalar_lea.vmem [#allocation2], %s163
        // Predicated region
        $region33: #{tpu_custom_call.1} parent=31 // pred_check
          %p165 = pneg %p41
        $region34: #{tpu_custom_call.1} parent=31 // pred_check_branch
          %167 = sbr.rel (%p165) target = $region36
        $region35: #{tpu_custom_call.1} parent=31 // pred_region
          %168 = dma.done %s161, 192
        $region36: #{tpu_custom_call.1} parent=31 // pred_fallthru
          _
        %s169 = sand.u32 %s28, 1
        %s170 = scalar_lea.sflag [#allocation3], %s169
        %s171 = sand.u32 %s28, 1
        %s172 = smul.addr %s171, 12
        %s173 = scalar_lea.vmem [#allocation2], %s172
        %p174 = pneg %p41
        %p175 = pneg %p38
        %p176 = pneg %p62
        %p177 = pneg %p59
        %p178 = pneg %p83
        %p179 = pneg %p80
        %p180 = pneg %p109
        %p181 = pneg %p106
        %s182 = sand.u32 %s96, 1
        %s183 = scalar_lea.sflag [#allocation4], %s182
        %s184 = sand.u32 %s96, 1
        %s185 = smul.addr %s184, 16
        %s186 = scalar_lea.vmem [#allocation5], %s185
        %v187 = vld [vmem:[%s164] sm:$0xff]
        %v188 = vld [vmem:[%s164 + $0x8] sm:$0xf]
        %v189 = vlaneseq
        %v190 = vand.u32 %v189, 127
        %v191 = vadd.s32 %v190, 128
        %vm192 = vcmp.lt.s32.totalorder %v190, 0
        %v193 = vsub.s32 0, %v190
        %v194 = vsel %vm192, %v193, %v190
        %v195 = vshrl.u32 %v194, 4
        %v196 = vand.u32 %v194, 15
        %v197 = vsub.s32 0, %v196
        %v198 = vsel %vm192, %v197, %v196
        %vm199 = vcmp.lt.s32.totalorder %v191, 0
        %v200 = vsub.s32 0, %v191
        %v201 = vsel %vm199, %v200, %v191
        %v202 = vshrl.u32 %v201, 4
        %v203 = vand.u32 %v201, 15
        %v204 = vsub.s32 0, %v203
        %v205 = vsel %vm199, %v204, %v203
        %vm206 = vcmp.ne.s32.totalorder %v198, 0
        %vm207 = vcmp.ne.s32.totalorder %v205, 0
        %vm208 = vcmp.lt.s32.totalorder %v198, 0
        %vm209 = vcmp.lt.s32.totalorder %v205, 0
        %vm210 = vmand %vm208, %vm206
        %vm211 = vmand %vm209, %vm207
        %v212 = vadd.s32 %v198, 16
        %v213 = vadd.s32 %v205, 16
        %v214 = vsel %vm210, %v212, %v198
        %v215 = vsel %vm211, %v213, %v205
        %vm216 = vcmp.ge.s32.totalorder %v214, 1
        %vm217 = vcmp.ge.s32.totalorder %v215, 1
        %v218 = vsel %vm216, 1, 0
        %v219 = vsel %vm217, 1, 0
        %vm220 = vcmp.eq.s32.totalorder %v218, 1
        %vm221 = vcmp.eq.s32.totalorder %v219, 1
        %v223 = vcombine.high %v187, %v187
        %v225 = vsel %vm220, %v187, 0.0
        %v226 = vsel %vm221, %v223, 0.0
        %vm227 = vcmp.lt.s32.totalorder %v214, 15
        %vm228 = vcmp.lt.s32.totalorder %v215, 15
        %v229 = vsel %vm227, 1, 0
        %v230 = vsel %vm228, 1, 0
        %vm231 = vcmp.eq.s32.totalorder %v229, 1
        %vm232 = vcmp.eq.s32.totalorder %v230, 1
        %234 = vrot.lane.b32.xlu0 %v187, 126
        %v235 = vpop.permute.xlu0 %234
        %236 = vrot.lane.b32.xlu0 %v223, 126
        %v237 = vpop.permute.xlu0 %236
        %238 = vrot.lane.b32.xlu0 %v188, 126
        %v239 = vpop.permute.xlu0 %238
        %vm240 = vcmask 1031168
        %v241 = vsel %vm240, %v235, %v237
        %v242 = vsel %vm240, %v237, %v239
        %v245 = vsel %vm231, %v241, 0.0
        %v246 = vsel %vm232, %v242, 0.0
        %247 = vrot.lane.b32.xlu0 %v187, 112
        %v248 = vpop.permute.xlu0 %247
        %249 = vrot.lane.b32.xlu0 %v223, 112
        %v250 = vpop.permute.xlu0 %249
        %251 = vrot.lane.b32.xlu0 %v188, 112
        %v252 = vpop.permute.xlu0 %251
        %vm253 = vcmask 916480
        %v254 = vsel %vm253, %v248, %v250
        %v255 = vsel %vm253, %v250, %v252
        %v258 = vsel %vm220, %v254, 0.0
        %v259 = vsel %vm221, %v255, 0.0
        %260 = vrot.lane.b32.xlu0 %v187, 110
        %v261 = vpop.permute.xlu0 %260
        %262 = vrot.lane.b32.xlu0 %v223, 110
        %v263 = vpop.permute.xlu0 %262
        %264 = vrot.lane.b32.xlu0 %v188, 110
        %v265 = vpop.permute.xlu0 %264
        %vm266 = vcmask 900096
        %v267 = vsel %vm266, %v261, %v263
        %v268 = vsel %vm266, %v263, %v265
        %v271 = vsel %vm231, %v267, 0.0
        %v272 = vsel %vm232, %v268, 0.0
        %273 = vrot.lane.b32.xlu0 %v187, 96
        %v274 = vpop.permute.xlu0 %273
        %275 = vrot.lane.b32.xlu0 %v223, 96
        %v276 = vpop.permute.xlu0 %275
        %277 = vrot.lane.b32.xlu0 %v188, 96
        %v278 = vpop.permute.xlu0 %277
        %vm279 = vcmask 785408
        %v280 = vsel %vm279, %v274, %v276
        %v281 = vsel %vm279, %v276, %v278
        %v284 = vsel %vm220, %v280, 0.0
        %v285 = vsel %vm221, %v281, 0.0
        %286 = vrot.lane.b32.xlu0 %v187, 94
        %v287 = vpop.permute.xlu0 %286
        %288 = vrot.lane.b32.xlu0 %v223, 94
        %v289 = vpop.permute.xlu0 %288
        %290 = vrot.lane.b32.xlu0 %v188, 94
        %v291 = vpop.permute.xlu0 %290
        %vm292 = vcmask 769024
        %v293 = vsel %vm292, %v287, %v289
        %v294 = vsel %vm292, %v289, %v291
        %v297 = vsel %vm231, %v293, 0.0
        %v298 = vsel %vm232, %v294, 0.0
        %v299 = vcombine.low %v187, %v187
        %v300 = vcombine.low %v188, %v188
        %301 = vrot.lane.b32.xlu0 %v299, 127
        %v302 = vpop.permute.xlu0 %301
        %303 = vrot.lane.b32.xlu0 %v187, 127
        %v304 = vpop.permute.xlu0 %303
        %305 = vrot.lane.b32.xlu0 %v300, 127
        %v306 = vpop.permute.xlu0 %305
        %vm307 = vcmask 1039360
        %v308 = vsel %vm307, %v302, %v304
        %v309 = vsel %vm307, %v304, %v306
        %v314 = vrot.slane %v258, 4
        %v315 = vrot.slane %v259, 4
        %318 = vrot.lane.b32.xlu0 %v187, 111
        %v319 = vpop.permute.xlu0 %318
        %320 = vrot.lane.b32.xlu0 %v223, 111
        %v321 = vpop.permute.xlu0 %320
        %322 = vrot.lane.b32.xlu0 %v188, 111
        %v323 = vpop.permute.xlu0 %322
        %vm324 = vcmask 908288
        %v325 = vsel %vm324, %v319, %v321
        %v326 = vsel %vm324, %v321, %v323
        %v331 = vrot.slane %v271, 4
        %v332 = vrot.slane %v272, 4
        %335 = vrot.lane.b32.xlu0 %v299, 95
        %v336 = vpop.permute.xlu0 %335
        %337 = vrot.lane.b32.xlu0 %v187, 95
        %v338 = vpop.permute.xlu0 %337
        %339 = vrot.lane.b32.xlu0 %v300, 95
        %v340 = vpop.permute.xlu0 %339
        %vm341 = vcmask 777216
        %v342 = vsel %vm341, %v336, %v338
        %v343 = vsel %vm341, %v338, %v340
        %vm346 = vcmask 1043456
        %v347 = vsel %vm346, %v225, %v308
        %v348 = vsel %vm346, %v226, %v309
        %v349 = vsel %vm346, %v245, %v314
        %v350 = vsel %vm346, %v246, %v315
        %v351 = vsel %vm346, %v325, %v331
        %v352 = vsel %vm346, %v326, %v332
        %v353 = vsel %vm346, %v284, %v342
        %v354 = vsel %vm346, %v285, %v343
        %v355 = vld [vmem:[%s1] sm:$0xff]
        %v356 = vld [vmem:[%s2] sm:$0xff]
        %358 = vset.pattern.permute.xlu0 0
        %359 = vperm.xlu0 %358, %v356
        %v360 = vpop.permute.xlu0 %359
        %vm362 = vcmask 293888
        %v364 = vsel %vm362, %v355, 0
        %v367 = vsel %vm346, %v297, 0
        %v370 = vsel %vm346, %v298, 0
        %372 = vmatprep.subr.mxu0 0.0
        %373 = vmatpush1.msra.mxu0 0.0
        %374 = vmatprep.subr.mxu0 0.0
        %375 = vmatpush1.msra.mxu0 0.0
        %376 = vmatprep.subr.mxu0 0.0
        %377 = vmatpush1.msra.mxu0 0.0
        %378 = vmatprep.subr.mxu0 0.0
        %379 = vmatpush1.msra.mxu0 0.0
        %380 = vmatprep.subr.mxu0 0.0
        %381 = vmatpush1.msra.mxu0 0.0
        %382 = vmatprep.subr.mxu0 0.0
        %383 = vmatpush1.msra.mxu0 0.0
        %384 = vmatprep.subr.mxu0 0.0
        %385 = vmatpush1.msra.mxu0 0.0
        %386 = vmatprep.subr.mxu0 0.0
        %387 = vmatpush1.msra.mxu0 0.0
        %388 = vmatprep.subr.mxu0 0.0
        %389 = vmatpush1.msra.mxu0 0.0
        %390 = vmatprep.subr.mxu0 0.0
        %391 = vmatpush1.msra.mxu0 0.0
        %392 = vmatprep.subr.mxu0 0.0
        %393 = vmatpush1.msra.mxu0 0.0
        %394 = vmatprep.subr.mxu0 %v370
        %395 = vmatpush1.msra.mxu0 %v367
        %396 = vmatprep.subr.mxu0 %v354
        %397 = vmatpush1.msra.mxu0 %v353
        %398 = vmatprep.subr.mxu0 %v352
        %399 = vmatpush1.msra.mxu0 %v351
        %400 = vmatprep.subr.mxu0 %v350
        %401 = vmatpush1.msra.mxu0 %v349
        %402 = vmatprep.subr.mxu0 %v348
        %403 = vmatpush1.msra.mxu0 %v347
        %404 = vmatprep.subr.mxu0 0.0
        %405 = vmatpush2.msra.mxu0 0.0
        %406 = vmatprep.subr.mxu0 0.0
        %407 = vmatpush2.msra.mxu0 0.0
        %408 = vmatprep.subr.mxu0 0.0
        %409 = vmatpush2.msra.mxu0 0.0
        %410 = vmatprep.subr.mxu0 0.0
        %411 = vmatpush2.msra.mxu0 0.0
        %412 = vmatprep.subr.mxu0 0.0
        %413 = vmatpush2.msra.mxu0 0.0
        %414 = vmatprep.subr.mxu0 0.0
        %415 = vmatpush2.msra.mxu0 0.0
        %416 = vmatprep.subr.mxu0 0.0
        %417 = vmatpush2.msra.mxu0 0.0
        %418 = vmatprep.subr.mxu0 0.0
        %419 = vmatpush2.msra.mxu0 0.0
        %420 = vmatprep.subr.mxu0 0.0
        %421 = vmatpush2.msra.mxu0 0.0
        %422 = vmatprep.subr.mxu0 0.0
        %423 = vmatpush2.msra.mxu0 0.0
        %424 = vmatprep.subr.mxu0 0.0
        %425 = vmatpush2.msra.mxu0 0.0
        %426 = vmatprep.subr.mxu0 0.0
        %427 = vmatpush2.msra.mxu0 0.0
        %428 = vmatprep.subr.mxu0 0.0
        %429 = vmatpush2.msra.mxu0 0.0
        %430 = vmatprep.subr.mxu0 0.0
        %431 = vmatpush2.msra.mxu0 0.0
        %432 = vmatprep.subr.mxu0 0.0
        %433 = vmatpush2.msra.mxu0 0.0
        %434 = vmatprep.subr.mxu0 0.0
        %435 = vmatpush2.msra.mxu0 0.0
        %436 = vmatprep.mubr.f32.mxu0 0.0
        %437 = vmatmul.mubr.f32.gmra.mxu0 %v364
        %v438 = vpop.f32.mrf.mxu0
        %v439 = vadd.f32 %v360, %v438
        %v440 = vpop.f32.mrf.mxu0
        %v441 = vadd.f32 %v360, %v440
        %442 = vdwg.mxu0
        %v443 = vmax.f32 %v439, 0.0
        %v444 = vmax.f32 %v441, 0.0
        %445 = vst [vmem:[%s186] sm:$0xff] %v443
        %446 = vst [vmem:[%s186 + $0x8] sm:$0xff] %v444
        %s447 = sand.u32 %s96, 1
        %s448 = scalar_lea.sflag [#allocation4], %s447
        %s449 = sand.u32 %s96, 1
        %s450 = smul.addr %s449, 16
        %s451 = scalar_lea.vmem [#allocation5], %s450
        // Predicated region
        $region37: #{tpu_custom_call.1} parent=31 // pred_check
          %p452 = pneg %p106
        $region38: #{tpu_custom_call.1} parent=31 // pred_check_branch
          %454 = sbr.rel (%p452) target = $region40
        $region39: #{tpu_custom_call.1} parent=31 // pred_region
          %s456 = ssub.s32 256, 256
          %457 = vsyncadd %s448, %s456
          %s458 = smul.addr %s20, 2
          %s459 = smul.addr %s458, 128
          %s460 = scalar_lea.hbm %s3, %s459
          %s462 = sshll.u32 %s451, 4
          %s463 = int_to_ptr.vmem [resolvable:$true] %s462
          %465 = dma.vmem_to_hbm [thread:$0]  %s463, 256, %s460, %s448
        $region40: #{tpu_custom_call.1} parent=31 // pred_fallthru
          _
      $region32: #{tpu_custom_call.1} parent=5 // pred_fallthru
        _
      %p466 = scmp.le.s32.totalorder 2, %s15
      // Predicated region
      $region41: #{tpu_custom_call.1} parent=5 // pred_check
        %p467 = pneg %p466
      $region42: #{tpu_custom_call.1} parent=5 // pred_check_branch
        %469 = sbr.rel (%p467) target = $region44
      $region43: #{tpu_custom_call.1} parent=5 // pred_region
        %s470 = ssub.s32 %s15, 2
        // Predicated region
        $region45: #{tpu_custom_call.1} parent=43 // pred_check
          %p471 = pneg %p112
        $region46: #{tpu_custom_call.1} parent=43 // pred_check_branch
          %473 = sbr.rel (%p471) target = $region48
        $region47: #{tpu_custom_call.1} parent=43 // pred_region
          %s474 = sand.u32 %s97, 1
          %s475 = scalar_lea.sflag [#allocation4], %s474
          %s476 = sand.u32 %s97, 1
          %s477 = smul.addr %s476, 16
          %s478 = scalar_lea.vmem [#allocation5], %s477
          %479 = dma.done %s475, 256
        $region48: #{tpu_custom_call.1} parent=43 // pred_fallthru
          _
      $region44: #{tpu_custom_call.1} parent=5 // pred_fallthru
        _
    $region6: #{tpu_custom_call.1} parent=1 // loop_footer
      %s19 = sadd.s32 1, %s15
    $region7: #{tpu_custom_call.1} parent=1 // loop_footer_branch
      %14 = sbr.rel target = $region3
    $region8: #{tpu_custom_call.1} parent=1 // loop_exit
      _
    %480 = vsyncpa [#allocation3], 1
    %s481 = scalar_lea.sflag [#allocation3], 1
    %482 = vsyncpa %s481, 1
    %483 = vsyncpa [#allocation4], 1
    %s484 = scalar_lea.sflag [#allocation4], 1
    %485 = vsyncpa %s484, 1

</llo_original>
